<compile_context>
chip_gen: v7x
topology: tpu7x:2x2x1
jax: 0.10.0
libtpu: 0.0.40
codegen_flags: <defaults>
</compile_context>

<pallas_src>
import functools

import jax
import jax.numpy as jnp
from jax import lax
from jax.experimental import pallas as pl
from jax.experimental.pallas import tpu as pltpu  # noqa: F401  (TPU backend)


# ------------------------------- Pallas kernel ------------------------------ #

def _attention_kernel(x_ref, pool_ref, wfc_ref, bfc_ref, wh_ref, bh_ref, o_ref,
                      *, inv_temp, kernel_off, kernel_num):
    # x_ref:    (N*HW, Cin)  channels-last input activations
    # pool_ref: (N, N*HW)    per-image mean-pool matrix (1/HW on own rows, else 0)
    # wfc_ref:  (Cin, A)     BN-folded fc weight
    # bfc_ref:  (1, A)       BN-folded fc bias
    # wh_ref:   (A, P)       packed [channel | filter | spatial | kernel] head weights
    # bh_ref:   (1, P)       packed head biases (zero in the pad lanes)
    # o_ref:    (N, P)       packed attention outputs (P multiple of 128)

    # Global average pool as an MXU matmul -> (N, Cin)
    pooled = jnp.dot(pool_ref[...], x_ref[...], preferred_element_type=jnp.float32)

    # fc (1x1 conv) + folded BN + ReLU -> (N, A)
    h = jnp.dot(pooled, wfc_ref[...], preferred_element_type=jnp.float32) + bfc_ref[...]
    h = jnp.maximum(h, 0.0)

    # All four heads in one lane-dense matmul -> logits (N, P)
    z = jnp.dot(h, wh_ref[...], preferred_element_type=jnp.float32) + bh_ref[...]
    z = z * inv_temp

    lane = lax.broadcasted_iota(jnp.int32, z.shape, 1)

    # Sigmoid heads occupy lanes [0, kernel_off)
    sig = 1.0 / (1.0 + jnp.exp(-z))

    # Kernel head: softmax restricted to lanes [kernel_off, kernel_off + kernel_num)
    in_k = (lane >= kernel_off) & (lane < kernel_off + kernel_num)
    zk = jnp.where(in_k, z, -1e30)
    zmax = jnp.max(zk, axis=-1, keepdims=True)
    ek = jnp.exp(zk - zmax)                       # non-kernel lanes underflow to 0
    soft = ek / jnp.sum(ek, axis=-1, keepdims=True)

    # Single full (lane-dense) store; pad lanes are written as 0.
    o_ref[...] = jnp.where(in_k, soft, jnp.where(lane < kernel_off, sig, 0.0))


# ------------------------------ Forward wrapper ------------------------------ #

def attention_forward(params, x_nchw, temperature=1.0):
    """Pallas implementation. x_nchw: (N, in_planes, H, W) ->
    (channel_att, filter_att, spatial_att, kernel_att) with PyTorch shapes."""
    N, cin, H, W = x_nchw.shape
    HW = H * W
    A = params["w_fc"].shape[1]
    in_planes = params["w_ch"].shape[1]
    out_planes = params["w_fl"].shape[1]
    ksq = params["w_sp"].shape[1]
    knum = params["w_k"].shape[1]
    k = int(round(ksq ** 0.5))

    # ---- fold BN (running stats) into fc, like fuse_conv_bn ----
    scale = params["bn_gamma"] / jnp.sqrt(params["bn_var"] + params["bn_eps"])   # (A,)
    w_fc = (params["w_fc"] * scale[None, :]).astype(jnp.float32)                  # (Cin, A)
    b_fc = (params["bn_beta"] - params["bn_mean"] * scale).reshape(1, A).astype(jnp.float32)

    # ---- pack the four head projections into one lane-dense (A, P) matrix ----
    off_ch = 0
    off_fl = off_ch + in_planes
    off_sp = off_fl + out_planes
    off_k = off_sp + ksq
    total = off_k + knum
    P = max(128, -(-total // 128) * 128)
    w_heads = jnp.zeros((A, P), jnp.float32)
    b_heads = jnp.zeros((1, P), jnp.float32)
    for off, w, b in ((off_ch, params["w_ch"], params["b_ch"]),
                      (off_fl, params["w_fl"], params["b_fl"]),
                      (off_sp, params["w_sp"], params["b_sp"]),
                      (off_k, params["w_k"], params["b_k"])):
        width = w.shape[1]
        w_heads = w_heads.at[:, off:off + width].set(w.astype(jnp.float32))
        b_heads = b_heads.at[:, off:off + width].set(b.astype(jnp.float32).reshape(1, width))

    # ---- channels-last activations (channels on TPU lanes) + mean-pool matrix ----
    x2d = jnp.transpose(x_nchw, (0, 2, 3, 1)).reshape(N * HW, cin).astype(jnp.float32)
    pool = jnp.repeat(jnp.eye(N, dtype=jnp.float32), HW, axis=1) * (1.0 / HW)     # (N, N*HW)

    kernel = functools.partial(_attention_kernel,
                               inv_temp=1.0 / float(temperature),
                               kernel_off=off_k, kernel_num=knum)

    # No grid: the whole problem is a single invocation; every operand lives in VMEM
    # (total < 100 KiB, fits on v5e/v6e/v7x). Intermediates stay in vregs/VMEM.
    packed = pl.pallas_call(
        kernel,
        out_shape=jax.ShapeDtypeStruct((N, P), jnp.float32),
    )(x2d, pool, w_fc, b_fc, w_heads, b_heads)

    channel_att = packed[:, off_ch:off_ch + in_planes].reshape(N, in_planes, 1, 1)
    filter_att = packed[:, off_fl:off_fl + out_planes].reshape(N, out_planes, 1, 1)
    spatial_att = packed[:, off_sp:off_sp + ksq].reshape(N, 1, 1, 1, k, k)
    kernel_att = packed[:, off_k:off_k + knum].reshape(N, knum, 1, 1, 1, 1)
    # TODO(synk): degenerate configs where func_filter/func_spatial/func_kernel are
    # `skip` (returning the Python constant 1.0) are a wrapper-level special case
    # and are not exercised here (the test config uses all four heads).
    return channel_att, filter_att, spatial_att, kernel_att


# -------------------------- Parameters (synthetic) --------------------------- #

def init_attention_params(key, in_planes, out_planes, kernel_size,
                          reduction=0.0625, kernel_num=4, min_channel=16, eps=1e-5):
    A = max(int(in_planes * reduction), min_channel)
    keys = jax.random.split(key, 12)

    def dense(kk, ci, co):
        return jax.random.normal(kk, (ci, co), jnp.float32) * (2.0 / ci) ** 0.5

    return dict(
        w_fc=dense(keys[0], in_planes, A),
        bn_gamma=1.0 + 0.1 * jax.random.normal(keys[1], (A,), jnp.float32),
        bn_beta=0.1 * jax.random.normal(keys[2], (A,), jnp.float32),
        bn_mean=0.1 * jax.random.normal(keys[3], (A,), jnp.float32),
        bn_var=jnp.abs(jax.random.normal(keys[4], (A,), jnp.float32)) + 0.5,
        bn_eps=eps,
        w_ch=dense(keys[5], A, in_planes),
        b_ch=0.1 * jax.random.normal(keys[6], (in_planes,), jnp.float32),
        w_fl=dense(keys[7], A, out_planes),
        b_fl=0.1 * jax.random.normal(keys[8], (out_planes,), jnp.float32),
        w_sp=dense(keys[9], A, kernel_size * kernel_size),
        b_sp=0.1 * jax.random.normal(keys[10], (kernel_size * kernel_size,), jnp.float32),
        w_k=dense(keys[11], A, kernel_num),
        b_k=jnp.zeros((kernel_num,), jnp.float32),
    )


# ------------------------------ Pure-JAX reference --------------------------- #

def attention_ref(params, x_nchw, temperature=1.0):
    N = x_nchw.shape[0]
    in_planes = params["w_ch"].shape[1]
    out_planes = params["w_fl"].shape[1]
    ksq = params["w_sp"].shape[1]
    knum = params["w_k"].shape[1]
    k = int(round(ksq ** 0.5))
    t = float(temperature)

    pooled = jnp.mean(x_nchw.astype(jnp.float32), axis=(2, 3))                  # (N, Cin)
    h = pooled @ params["w_fc"]                                                  # fc (no bias)
    h = ((h - params["bn_mean"]) / jnp.sqrt(params["bn_var"] + params["bn_eps"])
         * params["bn_gamma"] + params["bn_beta"])                               # BN (eval)
    h = jnp.maximum(h, 0.0)                                                      # ReLU

    ch = jax.nn.sigmoid((h @ params["w_ch"] + params["b_ch"]) / t).reshape(N, in_planes, 1, 1)
    fl = jax.nn.sigmoid((h @ params["w_fl"] + params["b_fl"]) / t).reshape(N, out_planes, 1, 1)
    sp = jax.nn.sigmoid((h @ params["w_sp"] + params["b_sp"]) / t).reshape(N, 1, 1, 1, k, k)
    ka = jax.nn.softmax((h @ params["w_k"] + params["b_k"]) / t, axis=-1)
    ka = ka.reshape(N, knum, 1, 1, 1, 1)
    return ch, fl, sp, ka


# ------------------------------------ Main ----------------------------------- #

if __name__ == "__main__":
    # Attention(in_planes=32, out_planes=64, kernel_size=3, groups=1,
    #           reduction=0.0625, kernel_num=4, min_channel=16)
    # -> attention_channel = max(int(32*0.0625), 16) = 16; all four heads active.
    in_planes, out_planes, kernel_size, kernel_num = 32, 64, 3, 4
    N, H, W = 2, 16, 16

    key = jax.random.PRNGKey(0)
    kp, kx = jax.random.split(key)
    params = init_attention_params(kp, in_planes, out_planes, kernel_size,
                                   kernel_num=kernel_num)
    x = jax.random.normal(kx, (N, in_planes, H, W), jnp.float32)   # NCHW, like PyTorch

    outs = jax.block_until_ready(attention_forward(params, x, temperature=1.0))
    refs = jax.block_until_ready(attention_ref(params, x, temperature=1.0))

    expected = [(N, in_planes, 1, 1), (N, out_planes, 1, 1),
                (N, 1, 1, 1, kernel_size, kernel_size),
                (N, kernel_num, 1, 1, 1, 1)]
    for o, r, s in zip(outs, refs, expected):
        assert o.shape == s, (o.shape, s)
        err = float(jnp.max(jnp.abs(o - r)))
        assert err < 1e-4, f"mismatch vs reference: max abs err = {err}"
    print("KERNEL_OK")
</pallas_src>

<mosaic_0001>
module attributes {stable_mosaic.version = 11 : i64} {
  func.func @_attention_kernel(%arg0: memref<512x32xf32, #tpu.memory_space<vmem>>, %arg1: memref<2x512xf32, #tpu.memory_space<vmem>>, %arg2: memref<32x16xf32, #tpu.memory_space<vmem>>, %arg3: memref<1x16xf32, #tpu.memory_space<vmem>>, %arg4: memref<16x128xf32, #tpu.memory_space<vmem>>, %arg5: memref<1x128xf32, #tpu.memory_space<vmem>>, %arg6: memref<2x128xf32, #tpu.memory_space<vmem>>) attributes {dimension_semantics = [], scalar_prefetch = 0 : i64, scratch_operands = 0 : i64, tpu.core_type = #tpu.core_type<tc>} {
    %c0 = arith.constant 0 : index
    %c0_0 = arith.constant 0 : index
    %0 = vector.load %arg1[%c0, %c0_0] : memref<2x512xf32, #tpu.memory_space<vmem>>, vector<2x512xf32>
    %c0_1 = arith.constant 0 : index
    %c0_2 = arith.constant 0 : index
    %1 = vector.load %arg0[%c0_1, %c0_2] : memref<512x32xf32, #tpu.memory_space<vmem>>, vector<512x32xf32>
    %cst = arith.constant dense<0.000000e+00> : vector<2x32xf32>
    %2 = tpu.matmul %0, %1, %cst {dimension_numbers = #tpu.dot_dimension_numbers<[1], [0], [0], [1], [0, 0, 1, 1], [], []>} : vector<2x512xf32>, vector<512x32xf32>, vector<2x32xf32> -> vector<2x32xf32>
    %c0_3 = arith.constant 0 : index
    %c0_4 = arith.constant 0 : index
    %3 = vector.load %arg2[%c0_3, %c0_4] : memref<32x16xf32, #tpu.memory_space<vmem>>, vector<32x16xf32>
    %cst_5 = arith.constant dense<0.000000e+00> : vector<2x16xf32>
    %4 = tpu.matmul %2, %3, %cst_5 {dimension_numbers = #tpu.dot_dimension_numbers<[1], [0], [0], [1], [0, 0, 1, 1], [], []>} : vector<2x32xf32>, vector<32x16xf32>, vector<2x16xf32> -> vector<2x16xf32>
    %c0_6 = arith.constant 0 : index
    %c0_7 = arith.constant 0 : index
    %5 = vector.load %arg3[%c0_6, %c0_7] : memref<1x16xf32, #tpu.memory_space<vmem>>, vector<1x16xf32>
    %6 = vector.broadcast %5 : vector<1x16xf32> to vector<2x16xf32>
    %7 = arith.addf %4, %6 : vector<2x16xf32>
    %cst_8 = arith.constant 0.000000e+00 : f32
    %8 = vector.broadcast %cst_8 : f32 to vector<2x16xf32>
    %9 = arith.maximumf %7, %8 : vector<2x16xf32>
    %c0_9 = arith.constant 0 : index
    %c0_10 = arith.constant 0 : index
    %10 = vector.load %arg4[%c0_9, %c0_10] : memref<16x128xf32, #tpu.memory_space<vmem>>, vector<16x128xf32>
    %cst_11 = arith.constant dense<0.000000e+00> : vector<2x128xf32>
    %11 = tpu.matmul %9, %10, %cst_11 {dimension_numbers = #tpu.dot_dimension_numbers<[1], [0], [0], [1], [0, 0, 1, 1], [], []>} : vector<2x16xf32>, vector<16x128xf32>, vector<2x128xf32> -> vector<2x128xf32>
    %c0_12 = arith.constant 0 : index
    %c0_13 = arith.constant 0 : index
    %12 = vector.load %arg5[%c0_12, %c0_13] : memref<1x128xf32, #tpu.memory_space<vmem>>, vector<1x128xf32>
    %13 = vector.broadcast %12 : vector<1x128xf32> to vector<2x128xf32>
    %14 = arith.addf %11, %13 : vector<2x128xf32>
    %cst_14 = arith.constant 1.000000e+00 : f32
    %15 = vector.broadcast %cst_14 : f32 to vector<2x128xf32>
    %16 = arith.mulf %14, %15 : vector<2x128xf32>
    %17 = tpu.iota {dimensions = array<i32: 1>} : vector<2x128xi32>
    %cst_15 = arith.constant 0.000000e+00 : f32
    %18 = vector.broadcast %cst_15 : f32 to vector<2x128xf32>
    %19 = arith.subf %18, %16 : vector<2x128xf32>
    %20 = math.exp %19 : vector<2x128xf32>
    %cst_16 = arith.constant 1.000000e+00 : f32
    %21 = vector.broadcast %cst_16 : f32 to vector<2x128xf32>
    %22 = arith.addf %21, %20 : vector<2x128xf32>
    %cst_17 = arith.constant 1.000000e+00 : f32
    %23 = vector.broadcast %cst_17 : f32 to vector<2x128xf32>
    %24 = arith.divf %23, %22 : vector<2x128xf32>
    %c105_i32 = arith.constant 105 : i32
    %25 = vector.broadcast %c105_i32 : i32 to vector<2x128xi32>
    %26 = arith.cmpi sge, %17, %25 : vector<2x128xi32>
    %c109_i32 = arith.constant 109 : i32
    %27 = vector.broadcast %c109_i32 : i32 to vector<2x128xi32>
    %28 = arith.cmpi slt, %17, %27 : vector<2x128xi32>
    %29 = arith.andi %26, %28 : vector<2x128xi1>
    %cst_18 = arith.constant -1.000000e+30 : f32
    %30 = vector.broadcast %cst_18 : f32 to vector<2x128xf32>
    %31 = arith.select %29, %16, %30 : vector<2x128xi1>, vector<2x128xf32>
    %cst_19 = arith.constant dense<0xFF800000> : vector<2xf32>
    %32 = vector.multi_reduction <maximumf>, %31, %cst_19 [1] : vector<2x128xf32> to vector<2xf32>
    %33 = vector.shape_cast %32 : vector<2xf32> to vector<2x1xf32>
    %34 = vector.broadcast %33 : vector<2x1xf32> to vector<2x128xf32>
    %35 = arith.subf %31, %34 : vector<2x128xf32>
    %36 = math.exp %35 : vector<2x128xf32>
    %cst_20 = arith.constant dense<0.000000e+00> : vector<2xf32>
    %37 = vector.multi_reduction <add>, %36, %cst_20 [1] : vector<2x128xf32> to vector<2xf32>
    %38 = vector.shape_cast %37 : vector<2xf32> to vector<2x1xf32>
    %39 = vector.broadcast %38 : vector<2x1xf32> to vector<2x128xf32>
    %40 = arith.divf %36, %39 : vector<2x128xf32>
    %c105_i32_21 = arith.constant 105 : i32
    %41 = vector.broadcast %c105_i32_21 : i32 to vector<2x128xi32>
    %42 = arith.cmpi slt, %17, %41 : vector<2x128xi32>
    %cst_22 = arith.constant 0.000000e+00 : f32
    %43 = vector.broadcast %cst_22 : f32 to vector<2x128xf32>
    %44 = arith.select %42, %24, %43 : vector<2x128xi1>, vector<2x128xf32>
    %45 = arith.select %29, %40, %44 : vector<2x128xi1>, vector<2x128xf32>
    %c0_23 = arith.constant 0 : index
    %c0_24 = arith.constant 0 : index
    %46 = vector.load %arg6[%c0_23, %c0_24] : memref<2x128xf32, #tpu.memory_space<vmem>>, vector<2x128xf32>
    tpu.vector_store %arg6[%c0_23, %c0_24], %45 {strides = array<i32>} : memref<2x128xf32, #tpu.memory_space<vmem>>, vector<2x128xf32>,
    return
  }
}

</mosaic_0001>

<llo_original>
// kernel: tpu_custom_call.1
$region0: #{tpu_custom_call.1}
  #allocation0 [shape = 'u32[]', space=smem, size = 0x4, offset = 0x4, fixed_abs, tag = 'smem constant byte address 0x4 - core index']
  #allocation1 [shape = 'u32[144,128]{1,0:T(1,128)}', space=vmem, size = 0x12000, scoped, tag = 'internal scratch']
  %s0 = inlined_call_operand.vmem [shape: f32[512,32], index: 0, kind: input, shape index: {}]
  %s1 = inlined_call_operand.vmem [shape: f32[2,512], index: 1, kind: input, shape index: {}]
  %s2 = inlined_call_operand.vmem [shape: f32[32,16], index: 2, kind: input, shape index: {}]
  %s3 = inlined_call_operand.vmem [shape: f32[1,16], index: 3, kind: input, shape index: {}]
  %s4 = inlined_call_operand.vmem [shape: f32[16,128], index: 4, kind: input, shape index: {}]
  %s5 = inlined_call_operand.vmem [shape: f32[1,128], index: 5, kind: input, shape index: {}]
  %s6 = inlined_call_operand.hbm [shape: f32[2,128], index: 6, kind: output, shape index: {}]
  %s7 = sld [smem:[#allocation0]]
  $region34: #{tpu_custom_call.1} parent=0
    _
  %s9 = ssub.s32 1, %s7
  %s10 = scalar_select 0, %s9, %s7
  $region1: #{tpu_custom_call.1} parent=0
    #allocation2 [shape = 'u8[1024]{0}', space=vmem, size = 0x400, scoped, tag = 'output window, operand 0, single buffered']
    #allocation3 [shape = 's32[1]{0}', space=sflag, size = 0x4, scoped, tag = 'scoped memory for tpu_custom_call.1']
    %11 = vsyncpa [#allocation3], 0
    // Predicated region
    $region2: #{tpu_custom_call.1} parent=1 // pred_check
      _
    $region3: #{tpu_custom_call.1} parent=1 // pred_check_branch
      %13 = sbr.rel (0) target = $region5
    $region4: #{tpu_custom_call.1} parent=1 // pred_region
      _
    $region5: #{tpu_custom_call.1} parent=1 // pred_fallthru
      _
    // Predicated region
    $region6: #{tpu_custom_call.1} parent=1 // pred_check
      _
    $region7: #{tpu_custom_call.1} parent=1 // pred_check_branch
      %15 = sbr.rel (0) target = $region9
    $region8: #{tpu_custom_call.1} parent=1 // pred_region
      _
    $region9: #{tpu_custom_call.1} parent=1 // pred_fallthru
      _
    // Predicated region
    $region10: #{tpu_custom_call.1} parent=1 // pred_check
      _
    $region11: #{tpu_custom_call.1} parent=1 // pred_check_branch
      %17 = sbr.rel (0) target = $region13
    $region12: #{tpu_custom_call.1} parent=1 // pred_region
      _
    $region13: #{tpu_custom_call.1} parent=1 // pred_fallthru
      _
    // Predicated region
    $region14: #{tpu_custom_call.1} parent=1 // pred_check
      _
    $region15: #{tpu_custom_call.1} parent=1 // pred_check_branch
      %19 = sbr.rel (0) target = $region17
    $region16: #{tpu_custom_call.1} parent=1 // pred_region
      _
    $region17: #{tpu_custom_call.1} parent=1 // pred_fallthru
      _
    // Predicated region
    $region18: #{tpu_custom_call.1} parent=1 // pred_check
      _
    $region19: #{tpu_custom_call.1} parent=1 // pred_check_branch
      %21 = sbr.rel (0) target = $region21
    $region20: #{tpu_custom_call.1} parent=1 // pred_region
      _
    $region21: #{tpu_custom_call.1} parent=1 // pred_fallthru
      _
    // Predicated region
    $region22: #{tpu_custom_call.1} parent=1 // pred_check
      _
    $region23: #{tpu_custom_call.1} parent=1 // pred_check_branch
      %23 = sbr.rel (0) target = $region25
    $region24: #{tpu_custom_call.1} parent=1 // pred_region
      _
    $region25: #{tpu_custom_call.1} parent=1 // pred_fallthru
      _
    %v24 = vld [vmem:[%s1] sm:$0xff]
    %v25 = vld [vmem:[%s0] sm:$0xff]
    %v26 = vld [vmem:[%s0 + $0x8] sm:$0xff]
    %v27 = vld [vmem:[%s0 + $0x10] sm:$0xff]
    %v28 = vld [vmem:[%s0 + $0x18] sm:$0xff]
    %v29 = vld [vmem:[%s0 + $0x20] sm:$0xff]
    %v30 = vld [vmem:[%s0 + $0x28] sm:$0xff]
    %v31 = vld [vmem:[%s0 + $0x30] sm:$0xff]
    %v32 = vld [vmem:[%s0 + $0x38] sm:$0xff]
    %v33 = vld [vmem:[%s0 + $0x40] sm:$0xff]
    %v34 = vld [vmem:[%s0 + $0x48] sm:$0xff]
    %v35 = vld [vmem:[%s0 + $0x50] sm:$0xff]
    %v36 = vld [vmem:[%s0 + $0x58] sm:$0xff]
    %v37 = vld [vmem:[%s0 + $0x60] sm:$0xff]
    %v38 = vld [vmem:[%s0 + $0x68] sm:$0xff]
    %v39 = vld [vmem:[%s0 + $0x70] sm:$0xff]
    %v40 = vld [vmem:[%s0 + $0x78] sm:$0xff]
    %v41 = vld [vmem:[%s0 + $0x80] sm:$0xff]
    %v42 = vld [vmem:[%s0 + $0x88] sm:$0xff]
    %v43 = vld [vmem:[%s0 + $0x90] sm:$0xff]
    %v44 = vld [vmem:[%s0 + $0x98] sm:$0xff]
    %v45 = vld [vmem:[%s0 + $0xa0] sm:$0xff]
    %v46 = vld [vmem:[%s0 + $0xa8] sm:$0xff]
    %v47 = vld [vmem:[%s0 + $0xb0] sm:$0xff]
    %v48 = vld [vmem:[%s0 + $0xb8] sm:$0xff]
    %v49 = vld [vmem:[%s0 + $0xc0] sm:$0xff]
    %v50 = vld [vmem:[%s0 + $0xc8] sm:$0xff]
    %v51 = vld [vmem:[%s0 + $0xd0] sm:$0xff]
    %v52 = vld [vmem:[%s0 + $0xd8] sm:$0xff]
    %v53 = vld [vmem:[%s0 + $0xe0] sm:$0xff]
    %v54 = vld [vmem:[%s0 + $0xe8] sm:$0xff]
    %v55 = vld [vmem:[%s0 + $0xf0] sm:$0xff]
    %v56 = vld [vmem:[%s0 + $0xf8] sm:$0xff]
    %v57 = vld [vmem:[%s0 + $0x100] sm:$0xff]
    %v58 = vld [vmem:[%s0 + $0x108] sm:$0xff]
    %v59 = vld [vmem:[%s0 + $0x110] sm:$0xff]
    %v60 = vld [vmem:[%s0 + $0x118] sm:$0xff]
    %v61 = vld [vmem:[%s0 + $0x120] sm:$0xff]
    %v62 = vld [vmem:[%s0 + $0x128] sm:$0xff]
    %v63 = vld [vmem:[%s0 + $0x130] sm:$0xff]
    %v64 = vld [vmem:[%s0 + $0x138] sm:$0xff]
    %v65 = vld [vmem:[%s0 + $0x140] sm:$0xff]
    %v66 = vld [vmem:[%s0 + $0x148] sm:$0xff]
    %v67 = vld [vmem:[%s0 + $0x150] sm:$0xff]
    %v68 = vld [vmem:[%s0 + $0x158] sm:$0xff]
    %v69 = vld [vmem:[%s0 + $0x160] sm:$0xff]
    %v70 = vld [vmem:[%s0 + $0x168] sm:$0xff]
    %v71 = vld [vmem:[%s0 + $0x170] sm:$0xff]
    %v72 = vld [vmem:[%s0 + $0x178] sm:$0xff]
    %v73 = vld [vmem:[%s0 + $0x180] sm:$0xff]
    %v74 = vld [vmem:[%s0 + $0x188] sm:$0xff]
    %v75 = vld [vmem:[%s0 + $0x190] sm:$0xff]
    %v76 = vld [vmem:[%s0 + $0x198] sm:$0xff]
    %v77 = vld [vmem:[%s0 + $0x1a0] sm:$0xff]
    %v78 = vld [vmem:[%s0 + $0x1a8] sm:$0xff]
    %v79 = vld [vmem:[%s0 + $0x1b0] sm:$0xff]
    %v80 = vld [vmem:[%s0 + $0x1b8] sm:$0xff]
    %v81 = vld [vmem:[%s0 + $0x1c0] sm:$0xff]
    %v82 = vld [vmem:[%s0 + $0x1c8] sm:$0xff]
    %v83 = vld [vmem:[%s0 + $0x1d0] sm:$0xff]
    %v84 = vld [vmem:[%s0 + $0x1d8] sm:$0xff]
    %v85 = vld [vmem:[%s0 + $0x1e0] sm:$0xff]
    %v86 = vld [vmem:[%s0 + $0x1e8] sm:$0xff]
    %v87 = vld [vmem:[%s0 + $0x1f0] sm:$0xff]
    %v88 = vld [vmem:[%s0 + $0x1f8] sm:$0xff]
    %v90 = vcombine.high %v24, %v24
    %v92 = vunpack.c.l.s4 1983009808
    %v93 = vunpack.c.0.s8 %v92
    %v94 = vlaneseq
    %v95 = vshrl.u32 %v94, 7
    %v96 = vsub.s32 %v93, %v95
    %v97 = vrot.slane %v24, %v96
    %v99 = vunpack.c.l.s4 1983009808
    %v100 = vunpack.c.0.s8 %v99
    %v101 = vlaneseq
    %v102 = vshrl.u32 %v101, 7
    %v103 = vsub.s32 %v100, %v102
    %v104 = vrot.slane %v90, %v103
    %v105 = vcombine.high %v97, %v97
    %v106 = vcombine.high %v104, %v104
    %111 = vmatprep.subr.mxu0 0.0
    %112 = vmatpush1.msra.mxu0 %v25
    %113 = vmatprep.subr.mxu0 0.0
    %114 = vmatpush1.msra.mxu0 %v26
    %115 = vmatprep.subr.mxu0 0.0
    %116 = vmatpush1.msra.mxu0 %v27
    %117 = vmatprep.subr.mxu0 0.0
    %118 = vmatpush1.msra.mxu0 %v28
    %119 = vmatprep.subr.mxu0 0.0
    %120 = vmatpush1.msra.mxu0 %v29
    %121 = vmatprep.subr.mxu0 0.0
    %122 = vmatpush1.msra.mxu0 %v30
    %123 = vmatprep.subr.mxu0 0.0
    %124 = vmatpush1.msra.mxu0 %v31
    %125 = vmatprep.subr.mxu0 0.0
    %126 = vmatpush1.msra.mxu0 %v32
    %127 = vmatprep.subr.mxu0 0.0
    %128 = vmatpush1.msra.mxu0 %v33
    %129 = vmatprep.subr.mxu0 0.0
    %130 = vmatpush1.msra.mxu0 %v34
    %131 = vmatprep.subr.mxu0 0.0
    %132 = vmatpush1.msra.mxu0 %v35
    %133 = vmatprep.subr.mxu0 0.0
    %134 = vmatpush1.msra.mxu0 %v36
    %135 = vmatprep.subr.mxu0 0.0
    %136 = vmatpush1.msra.mxu0 %v37
    %137 = vmatprep.subr.mxu0 0.0
    %138 = vmatpush1.msra.mxu0 %v38
    %139 = vmatprep.subr.mxu0 0.0
    %140 = vmatpush1.msra.mxu0 %v39
    %141 = vmatprep.subr.mxu0 0.0
    %142 = vmatpush1.msra.mxu0 %v40
    %143 = vmatprep.subr.mxu0 0.0
    %144 = vmatpush1.msra.mxu0 %v41
    %145 = vmatprep.subr.mxu0 0.0
    %146 = vmatpush1.msra.mxu0 %v42
    %147 = vmatprep.subr.mxu0 0.0
    %148 = vmatpush1.msra.mxu0 %v43
    %149 = vmatprep.subr.mxu0 0.0
    %150 = vmatpush1.msra.mxu0 %v44
    %151 = vmatprep.subr.mxu0 0.0
    %152 = vmatpush1.msra.mxu0 %v45
    %153 = vmatprep.subr.mxu0 0.0
    %154 = vmatpush1.msra.mxu0 %v46
    %155 = vmatprep.subr.mxu0 0.0
    %156 = vmatpush1.msra.mxu0 %v47
    %157 = vmatprep.subr.mxu0 0.0
    %158 = vmatpush1.msra.mxu0 %v48
    %159 = vmatprep.subr.mxu0 0.0
    %160 = vmatpush1.msra.mxu0 %v49
    %161 = vmatprep.subr.mxu0 0.0
    %162 = vmatpush1.msra.mxu0 %v50
    %163 = vmatprep.subr.mxu0 0.0
    %164 = vmatpush1.msra.mxu0 %v51
    %165 = vmatprep.subr.mxu0 0.0
    %166 = vmatpush1.msra.mxu0 %v52
    %167 = vmatprep.subr.mxu0 0.0
    %168 = vmatpush1.msra.mxu0 %v53
    %169 = vmatprep.subr.mxu0 0.0
    %170 = vmatpush1.msra.mxu0 %v54
    %171 = vmatprep.subr.mxu0 0.0
    %172 = vmatpush1.msra.mxu0 %v55
    %173 = vmatprep.subr.mxu0 0.0
    %174 = vmatpush1.msra.mxu0 %v56
    %175 = vmatprep.mubr.f32.mxu0 %v105
    %176 = vmatmul.mubr.f32.gmra.mrb[0].mxu0 %v97
    %v177 = vpop.f32.mrb[0].mxu0
    %v178 = vadd.f32 0.0, %v177
    %v179 = vpop.f32.mrb[0].mxu0
    %180 = vdwg.mxu0
    %181 = vmatprep.subr.mxu0 0.0
    %182 = vmatpush1.msra.mxu0 %v57
    %183 = vmatprep.subr.mxu0 0.0
    %184 = vmatpush1.msra.mxu0 %v58
    %185 = vmatprep.subr.mxu0 0.0
    %186 = vmatpush1.msra.mxu0 %v59
    %187 = vmatprep.subr.mxu0 0.0
    %188 = vmatpush1.msra.mxu0 %v60
    %189 = vmatprep.subr.mxu0 0.0
    %190 = vmatpush1.msra.mxu0 %v61
    %191 = vmatprep.subr.mxu0 0.0
    %192 = vmatpush1.msra.mxu0 %v62
    %193 = vmatprep.subr.mxu0 0.0
    %194 = vmatpush1.msra.mxu0 %v63
    %195 = vmatprep.subr.mxu0 0.0
    %196 = vmatpush1.msra.mxu0 %v64
    %197 = vmatprep.subr.mxu0 0.0
    %198 = vmatpush1.msra.mxu0 %v65
    %199 = vmatprep.subr.mxu0 0.0
    %200 = vmatpush1.msra.mxu0 %v66
    %201 = vmatprep.subr.mxu0 0.0
    %202 = vmatpush1.msra.mxu0 %v67
    %203 = vmatprep.subr.mxu0 0.0
    %204 = vmatpush1.msra.mxu0 %v68
    %205 = vmatprep.subr.mxu0 0.0
    %206 = vmatpush1.msra.mxu0 %v69
    %207 = vmatprep.subr.mxu0 0.0
    %208 = vmatpush1.msra.mxu0 %v70
    %209 = vmatprep.subr.mxu0 0.0
    %210 = vmatpush1.msra.mxu0 %v71
    %211 = vmatprep.subr.mxu0 0.0
    %212 = vmatpush1.msra.mxu0 %v72
    %213 = vmatprep.subr.mxu0 0.0
    %214 = vmatpush1.msra.mxu0 %v73
    %215 = vmatprep.subr.mxu0 0.0
    %216 = vmatpush1.msra.mxu0 %v74
    %217 = vmatprep.subr.mxu0 0.0
    %218 = vmatpush1.msra.mxu0 %v75
    %219 = vmatprep.subr.mxu0 0.0
    %220 = vmatpush1.msra.mxu0 %v76
    %221 = vmatprep.subr.mxu0 0.0
    %222 = vmatpush1.msra.mxu0 %v77
    %223 = vmatprep.subr.mxu0 0.0
    %224 = vmatpush1.msra.mxu0 %v78
    %225 = vmatprep.subr.mxu0 0.0
    %226 = vmatpush1.msra.mxu0 %v79
    %227 = vmatprep.subr.mxu0 0.0
    %228 = vmatpush1.msra.mxu0 %v80
    %229 = vmatprep.subr.mxu0 0.0
    %230 = vmatpush1.msra.mxu0 %v81
    %231 = vmatprep.subr.mxu0 0.0
    %232 = vmatpush1.msra.mxu0 %v82
    %233 = vmatprep.subr.mxu0 0.0
    %234 = vmatpush1.msra.mxu0 %v83
    %235 = vmatprep.subr.mxu0 0.0
    %236 = vmatpush1.msra.mxu0 %v84
    %237 = vmatprep.subr.mxu0 0.0
    %238 = vmatpush1.msra.mxu0 %v85
    %239 = vmatprep.subr.mxu0 0.0
    %240 = vmatpush1.msra.mxu0 %v86
    %241 = vmatprep.subr.mxu0 0.0
    %242 = vmatpush1.msra.mxu0 %v87
    %243 = vmatprep.subr.mxu0 0.0
    %244 = vmatpush1.msra.mxu0 %v88
    %245 = vmatprep.mubr.f32.mxu0 %v106
    %246 = vmatmul.mubr.f32.gmra.mrb[0].mxu0 %v104
    %v247 = vpop.f32.mrb[0].mxu0
    %v248 = vadd.f32 %v178, %v247
    %v249 = vpop.f32.mrb[0].mxu0
    %250 = vdwg.mxu0
    %v251 = vld [vmem:[%s2] sm:$0xff]
    %v252 = vld [vmem:[%s2 + $0x8] sm:$0xff]
    %v253 = vld [vmem:[%s2 + $0x10] sm:$0xff]
    %v254 = vld [vmem:[%s2 + $0x18] sm:$0xff]
    %v255 = vld [vmem:[%s3] sm:$0x1]
    %v257 = vlaneseq
    %v258 = vshrl.u32 %v257, 7
    %v259 = vsub.s32 0, %v258
    %v260 = vrot.slane %v255, %v259
    %vm262 = vcmask 261120
    %v264 = vsel %vm262, %v248, 0
    %266 = vmatprep.subr.mxu0 0.0
    %267 = vmatpush1.msra.mxu0 %v251
    %268 = vmatprep.subr.mxu0 0.0
    %269 = vmatpush1.msra.mxu0 %v252
    %270 = vmatprep.subr.mxu0 0.0
    %271 = vmatpush1.msra.mxu0 %v253
    %272 = vmatprep.subr.mxu0 0.0
    %273 = vmatpush1.msra.mxu0 %v254
    %274 = vmatprep.subr.mxu0 0.0
    %275 = vmatpush1.msra.mxu0 0.0
    %276 = vmatprep.subr.mxu0 0.0
    %277 = vmatpush1.msra.mxu0 0.0
    %278 = vmatprep.subr.mxu0 0.0
    %279 = vmatpush1.msra.mxu0 0.0
    %280 = vmatprep.subr.mxu0 0.0
    %281 = vmatpush1.msra.mxu0 0.0
    %282 = vmatprep.subr.mxu0 0.0
    %283 = vmatpush1.msra.mxu0 0.0
    %284 = vmatprep.subr.mxu0 0.0
    %285 = vmatpush1.msra.mxu0 0.0
    %286 = vmatprep.subr.mxu0 0.0
    %287 = vmatpush1.msra.mxu0 0.0
    %288 = vmatprep.subr.mxu0 0.0
    %289 = vmatpush1.msra.mxu0 0.0
    %290 = vmatprep.subr.mxu0 0.0
    %291 = vmatpush1.msra.mxu0 0.0
    %292 = vmatprep.subr.mxu0 0.0
    %293 = vmatpush1.msra.mxu0 0.0
    %294 = vmatprep.subr.mxu0 0.0
    %295 = vmatpush1.msra.mxu0 0.0
    %296 = vmatprep.subr.mxu0 0.0
    %297 = vmatpush1.msra.mxu0 0.0
    %298 = vmatprep.subr.mxu0 0.0
    %299 = vmatpush1.msra.mxu0 0.0
    %300 = vmatprep.subr.mxu0 0.0
    %301 = vmatpush1.msra.mxu0 0.0
    %302 = vmatprep.subr.mxu0 0.0
    %303 = vmatpush1.msra.mxu0 0.0
    %304 = vmatprep.subr.mxu0 0.0
    %305 = vmatpush1.msra.mxu0 0.0
    %306 = vmatprep.subr.mxu0 0.0
    %307 = vmatpush1.msra.mxu0 0.0
    %308 = vmatprep.subr.mxu0 0.0
    %309 = vmatpush1.msra.mxu0 0.0
    %310 = vmatprep.subr.mxu0 0.0
    %311 = vmatpush1.msra.mxu0 0.0
    %312 = vmatprep.subr.mxu0 0.0
    %313 = vmatpush1.msra.mxu0 0.0
    %314 = vmatprep.subr.mxu0 0.0
    %315 = vmatpush1.msra.mxu0 0.0
    %316 = vmatprep.subr.mxu0 0.0
    %317 = vmatpush1.msra.mxu0 0.0
    %318 = vmatprep.subr.mxu0 0.0
    %319 = vmatpush1.msra.mxu0 0.0
    %320 = vmatprep.subr.mxu0 0.0
    %321 = vmatpush1.msra.mxu0 0.0
    %322 = vmatprep.subr.mxu0 0.0
    %323 = vmatpush1.msra.mxu0 0.0
    %324 = vmatprep.subr.mxu0 0.0
    %325 = vmatpush1.msra.mxu0 0.0
    %326 = vmatprep.subr.mxu0 0.0
    %327 = vmatpush1.msra.mxu0 0.0
    %328 = vmatprep.subr.mxu0 0.0
    %329 = vmatpush1.msra.mxu0 0.0
    %330 = vmatprep.mubr.f32.mxu0 0.0
    %331 = vmatmul.mubr.f32.gmra.mrb[0].mxu0 %v264
    %v332 = vpop.f32.mrb[0].mxu0
    %v333 = vadd.f32 %v260, %v332
    %v334 = vpop.f32.mrb[0].mxu0
    %335 = vdwg.mxu0
    %v336 = vmax.f32 %v333, 0.0
    %v337 = vld [vmem:[%s4] sm:$0xff]
    %v338 = vld [vmem:[%s4 + $0x8] sm:$0xff]
    %v339 = vld [vmem:[%s5] sm:$0x1]
    %v341 = vlaneseq
    %v342 = vshrl.u32 %v341, 7
    %v343 = vsub.s32 0, %v342
    %v344 = vrot.slane %v339, %v343
    %vm346 = vcmask 130048
    %v348 = vsel %vm346, %v336, 0
    %350 = vmatprep.subr.mxu0 0.0
    %351 = vmatpush1.msra.mxu0 %v337
    %352 = vmatprep.subr.mxu0 0.0
    %353 = vmatpush1.msra.mxu0 %v338
    %354 = vmatprep.subr.mxu0 0.0
    %355 = vmatpush1.msra.mxu0 0.0
    %356 = vmatprep.subr.mxu0 0.0
    %357 = vmatpush1.msra.mxu0 0.0
    %358 = vmatprep.subr.mxu0 0.0
    %359 = vmatpush1.msra.mxu0 0.0
    %360 = vmatprep.subr.mxu0 0.0
    %361 = vmatpush1.msra.mxu0 0.0
    %362 = vmatprep.subr.mxu0 0.0
    %363 = vmatpush1.msra.mxu0 0.0
    %364 = vmatprep.subr.mxu0 0.0
    %365 = vmatpush1.msra.mxu0 0.0
    %366 = vmatprep.subr.mxu0 0.0
    %367 = vmatpush1.msra.mxu0 0.0
    %368 = vmatprep.subr.mxu0 0.0
    %369 = vmatpush1.msra.mxu0 0.0
    %370 = vmatprep.subr.mxu0 0.0
    %371 = vmatpush1.msra.mxu0 0.0
    %372 = vmatprep.subr.mxu0 0.0
    %373 = vmatpush1.msra.mxu0 0.0
    %374 = vmatprep.subr.mxu0 0.0
    %375 = vmatpush1.msra.mxu0 0.0
    %376 = vmatprep.subr.mxu0 0.0
    %377 = vmatpush1.msra.mxu0 0.0
    %378 = vmatprep.subr.mxu0 0.0
    %379 = vmatpush1.msra.mxu0 0.0
    %380 = vmatprep.subr.mxu0 0.0
    %381 = vmatpush1.msra.mxu0 0.0
    %382 = vmatprep.subr.mxu0 0.0
    %383 = vmatpush1.msra.mxu0 0.0
    %384 = vmatprep.subr.mxu0 0.0
    %385 = vmatpush1.msra.mxu0 0.0
    %386 = vmatprep.subr.mxu0 0.0
    %387 = vmatpush1.msra.mxu0 0.0
    %388 = vmatprep.subr.mxu0 0.0
    %389 = vmatpush1.msra.mxu0 0.0
    %390 = vmatprep.subr.mxu0 0.0
    %391 = vmatpush1.msra.mxu0 0.0
    %392 = vmatprep.subr.mxu0 0.0
    %393 = vmatpush1.msra.mxu0 0.0
    %394 = vmatprep.subr.mxu0 0.0
    %395 = vmatpush1.msra.mxu0 0.0
    %396 = vmatprep.subr.mxu0 0.0
    %397 = vmatpush1.msra.mxu0 0.0
    %398 = vmatprep.subr.mxu0 0.0
    %399 = vmatpush1.msra.mxu0 0.0
    %400 = vmatprep.subr.mxu0 0.0
    %401 = vmatpush1.msra.mxu0 0.0
    %402 = vmatprep.subr.mxu0 0.0
    %403 = vmatpush1.msra.mxu0 0.0
    %404 = vmatprep.subr.mxu0 0.0
    %405 = vmatpush1.msra.mxu0 0.0
    %406 = vmatprep.subr.mxu0 0.0
    %407 = vmatpush1.msra.mxu0 0.0
    %408 = vmatprep.subr.mxu0 0.0
    %409 = vmatpush1.msra.mxu0 0.0
    %410 = vmatprep.subr.mxu0 0.0
    %411 = vmatpush1.msra.mxu0 0.0
    %412 = vmatprep.subr.mxu0 0.0
    %413 = vmatpush1.msra.mxu0 0.0
    %414 = vmatprep.mubr.f32.mxu0 0.0
    %415 = vmatmul.mubr.f32.gmra.mrb[0].mxu0 %v348
    %v416 = vpop.f32.mrb[0].mxu0
    %v417 = vadd.f32 %v344, %v416
    %v418 = vpop.f32.mrb[0].mxu0
    %419 = vdwg.mxu0
    %v420 = vlaneseq
    %v421 = vand.u32 %v420, 127
    %v422 = vsub.f32 0.0, %v417
    %v423 = vmul.f32 %v422, 1.442695
    %v424 = vpow.pop %v423
    %v425 = vadd.f32 %v424, 1.0
    %v426 = vrcp.pop %v425
    %v427 = vmul.f32 1.0, %v426
    %vm428 = vcmp.ge.s32.totalorder %v421, 105
    %vm429 = vcmp.lt.s32.totalorder %v421, 109
    %vm430 = vmand %vm428, %vm429
    %v431 = vsel %vm430, %v417, -1e+30
    %vm432 = vcmask 1041408
    %v433 = vsel %vm432, %v431, -inf
    %434 = vmax.xlane.f32.xlu0 %v433
    %v435 = vpop.xlane.xlu0 %434
    %v436 = vsub.f32 %v431, %v435
    %v437 = vmul.f32 %v436, 1.442695
    %v438 = vpow.pop %v437
    %v439 = vsel %vm432, %v438, 0.0
    %440 = vadd.xlane.f32.xlu0 %v439
    %v441 = vpop.xlane.xlu0 %440
    %v442 = vrcp.pop %v441
    %v443 = vmul.f32 %v438, %v442
    %vm444 = vcmp.lt.s32.totalorder %v421, 105
    %v445 = vsel %vm444, %v427, 0.0
    %v446 = vsel %vm430, %v443, %v445
    %447 = vst [vmem:[#allocation2] sm:$0x3] %v446
    // Predicated region
    $region26: #{tpu_custom_call.1} parent=1 // pred_check
      _
    $region27: #{tpu_custom_call.1} parent=1 // pred_check_branch
      %449 = sbr.rel (0) target = $region29
    $region28: #{tpu_custom_call.1} parent=1 // pred_region
      %s451 = ssub.s32 32, 32
      %452 = vsyncadd [#allocation3], %s451
      %s454 = sshll.u32 [#allocation2], 4
      %s455 = int_to_ptr.vmem [resolvable:$true] %s454
      %457 = dma.vmem_to_hbm [thread:$0]  %s455, 32, %s6, [#allocation3]
    $region29: #{tpu_custom_call.1} parent=1 // pred_fallthru
      _
    // Predicated region
    $region30: #{tpu_custom_call.1} parent=1 // pred_check
      _
    $region31: #{tpu_custom_call.1} parent=1 // pred_check_branch
      %459 = sbr.rel (0) target = $region33
    $region32: #{tpu_custom_call.1} parent=1 // pred_region
      %460 = dma.done [#allocation3], 32
    $region33: #{tpu_custom_call.1} parent=1 // pred_fallthru
      _
    %461 = vsyncpa [#allocation3], 1

</llo_original>
